<compile_context>
chip_gen: v7x
topology: tpu7x:2x2x1
jax: 0.10.0
libtpu: 0.0.40
codegen_flags: <defaults>
</compile_context>

<pallas_src>
import functools

import numpy as np
import jax
import jax.numpy as jnp
from jax import lax
from jax.experimental import pallas as pl
from jax.experimental.pallas import tpu as pltpu

_BN_EPS = 1e-5

_BLUR_TAPS = {
    1: np.array([1.0]),
    2: np.array([1.0, 1.0]),
    3: np.array([1.0, 2.0, 1.0]),
    4: np.array([1.0, 3.0, 3.0, 1.0]),
    5: np.array([1.0, 4.0, 6.0, 4.0, 1.0]),
    6: np.array([1.0, 5.0, 10.0, 10.0, 5.0, 1.0]),
    7: np.array([1.0, 6.0, 15.0, 20.0, 15.0, 6.0, 1.0]),
}


# ---------------------------------------------------------------------------
# Generation-specific VMEM sizing policy (perf review: per-chip budgets).
# ---------------------------------------------------------------------------
@functools.lru_cache(maxsize=1)
def _vmem_policy():
    """Returns (tile_sizing_budget_bytes, vmem_limit_ceiling_bytes)."""
    try:
        cap = int(pltpu.get_tpu_info().vmem_capacity_bytes)
    except Exception:
        cap = 64 << 20  # conservative (v7x-sized) fallback
    if cap >= (96 << 20):          # v5e / v6e: 128 MiB physical VMEM
        return 40 << 20, 96 << 20
    return 22 << 20, 48 << 20      # v7x: 64 MiB physical VMEM


# ---------------------------------------------------------------------------
# Core Pallas kernel: channel-mixing GEMM with fused scale/shift (+ReLU).
#   y[b] = act( (W @ x[b]) * scale + shift )   with f32 accumulation.
# ---------------------------------------------------------------------------
def _make_channel_mix_kernel(relu, precision):
    def kernel(x_ref, w_ref, scale_ref, shift_ref, o_ref):
        # x_ref: (C_in, TL); w_ref: (C_out, C_in); scale/shift: (C_out, 1) f32.
        acc = jnp.dot(w_ref[...], x_ref[...],
                      preferred_element_type=jnp.float32,
                      precision=precision)                       # (C_out, TL)
        y = acc * scale_ref[...] + shift_ref[...]                # fused bias/BN
        if relu:
            y = jnp.maximum(y, 0.0)
        o_ref[...] = y.astype(o_ref.dtype)
    return kernel


def channel_mix(x, w2d, scale, shift, *, relu=False, out_dtype=None,
                tl_target=None):
    """y[b] = act((W @ x[b]) * scale + shift) for x: (B, C_in, L) -> (B, C_out, L).

    bf16 activations/weights are supported end-to-end (the kernel accumulates
    in f32); keeping bf16 halves HBM traffic for this memory-bound op.  L that
    is a multiple of 128 gives fully unmasked lane-dense stores.
    """
    B, C_in, L = x.shape
    C_out = w2d.shape[0]
    assert w2d.shape == (C_out, C_in)
    out_dtype = out_dtype or x.dtype

    budget, vmem_ceiling = _vmem_policy()
    in_b = jnp.dtype(x.dtype).itemsize
    out_b = jnp.dtype(out_dtype).itemsize
    # Per-lane VMEM bytes: double-buffered input + output blocks plus the f32
    # matmul result / epilogue intermediate (review: count f32 intermediates).
    per_lane = 2 * C_in * in_b + 2 * C_out * out_b + C_out * 4

    # TL-first sizing; BN (batch rows per grid step) is fixed to 1, so there is
    # no Python unroll, no repeated bias broadcast and no per-row vreg pressure.
    tl_cap = max(128, (int(budget // per_lane) // 128) * 128)
    if tl_target is not None:
        tl_cap = min(tl_cap, max(128, (int(tl_target) // 128) * 128))

    if L % 128 == 0:
        TL = min(L, tl_cap)
    elif L <= tl_cap:
        TL = L        # full-extent block; only the tail vreg per row is masked
    else:
        TL = tl_cap   # partial tail block; OOB output lanes are masked

    # v7x has 2 TensorCores: guarantee >=2 grid blocks when B == 1.
    if B == 1 and TL >= L and L >= 256:
        TL = max(128, ((L // 2 + 127) // 128) * 128)

    grid = (B, pl.cdiv(L, TL))

    # NOTE: the contraction is only over C_in, which is never tiled/padded, so
    # garbage in padded tail lanes only lands in masked (discarded) output
    # lanes.  Do NOT tile C_in without revisiting tail-block handling.

    scale2 = jnp.asarray(scale, jnp.float32).reshape(C_out, 1)
    shift2 = jnp.asarray(shift, jnp.float32).reshape(C_out, 1)
    w2d = w2d.astype(x.dtype)

    # f32 inputs: HIGHEST so the MXU matmul matches f32 conv accuracy.
    precision = lax.Precision.HIGHEST if x.dtype == jnp.float32 else None
    kernel = _make_channel_mix_kernel(relu, precision)

    in_specs = [
        pl.BlockSpec((None, C_in, TL), lambda b, l: (b, 0, l)),
        pl.BlockSpec((C_out, C_in), lambda b, l: (0, 0)),   # resident weight
        pl.BlockSpec((C_out, 1), lambda b, l: (0, 0)),      # resident scale
        pl.BlockSpec((C_out, 1), lambda b, l: (0, 0)),      # resident shift
    ]
    out_spec = pl.BlockSpec((None, C_out, TL), lambda b, l: (b, 0, l))

    resident = C_out * C_in * jnp.dtype(w2d.dtype).itemsize + 2 * C_out * 4
    footprint = per_lane * TL + 2 * resident
    vmem_limit = int(min(max(32 << 20, 2 * footprint), vmem_ceiling))

    cost = pl.CostEstimate(
        flops=2 * B * C_out * C_in * L,
        transcendentals=0,
        bytes_accessed=int(B * L * (C_in * in_b + C_out * out_b) + resident),
    )

    return pl.pallas_call(
        kernel,
        out_shape=jax.ShapeDtypeStruct((B, C_out, L), out_dtype),
        grid_spec=pltpu.PrefetchScalarGridSpec(
            num_scalar_prefetch=0, grid=grid,
            in_specs=in_specs, out_specs=out_spec),
        compiler_params=pltpu.CompilerParams(
            dimension_semantics=("parallel", "parallel"),
            vmem_limit_bytes=vmem_limit),
        cost_estimate=cost,
    )(x, w2d, scale2, shift2)


# ---------------------------------------------------------------------------
# Depthwise binomial blur (the ApsUp smoothing filter) as a VPU Pallas kernel.
# ---------------------------------------------------------------------------
def _make_blur_kernel(coeffs, h_out, w_out):
    def kernel(x_ref, o_ref):
        x = x_ref[...].astype(jnp.float32)          # (C, Hp, Wp)
        acc = jnp.zeros((x.shape[0], h_out, w_out), jnp.float32)
        for di, dj, c in coeffs:                    # static taps -> VPU FMAs
            acc = acc + c * x[:, di:di + h_out, dj:dj + w_out]
        o_ref[...] = acc.astype(o_ref.dtype)
    return kernel


def aps_blur(x, filt_size=3):
    """Depthwise binomial blur with circular padding.

    # TODO(synk): the source builds the filter as (C, k, k) and calls F.conv1d
    # on a 4-D tensor (and get_pad_layer_1d('circular') is undefined) -- that
    # path cannot execute in PyTorch; this is the intended 2-D depthwise blur.
    """
    if filt_size == 1:
        return x
    a = _BLUR_TAPS[filt_size]
    f2 = np.outer(a, a)
    f2 = f2 / f2.sum()
    p0 = int((filt_size - 1) / 2)
    p1 = int(np.ceil((filt_size - 1) / 2.0))
    xp = jnp.pad(x, ((0, 0), (0, 0), (p0, p1), (p0, p1)), mode="wrap")
    B, C, Hp, Wp = xp.shape
    Ho, Wo = Hp - filt_size + 1, Wp - filt_size + 1
    coeffs = [(di, dj, float(f2[di, dj]))
              for di in range(filt_size) for dj in range(filt_size)]
    # TODO(synk): one full (C, Hp, Wp) block per batch row; tile C/H for very
    # large feature maps.
    return pl.pallas_call(
        _make_blur_kernel(coeffs, Ho, Wo),
        out_shape=jax.ShapeDtypeStruct((B, C, Ho, Wo), x.dtype),
        grid_spec=pltpu.PrefetchScalarGridSpec(
            num_scalar_prefetch=0, grid=(B,),
            in_specs=[pl.BlockSpec((None, C, Hp, Wp), lambda b: (b, 0, 0, 0))],
            out_specs=pl.BlockSpec((None, C, Ho, Wo), lambda b: (b, 0, 0, 0))),
        compiler_params=pltpu.CompilerParams(
            dimension_semantics=("parallel",)),
    )(xp)


# ---------------------------------------------------------------------------
# APS data-movement helpers (plain JAX: per-batch data-dependent placement).
# ---------------------------------------------------------------------------
def aps_pad(x):
    n1, n2 = x.shape[2], x.shape[3]
    if n1 % 2 != 0:
        x = jnp.pad(x, ((0, 0), (0, 0), (0, 1), (0, 0)), mode="wrap")
    if n2 % 2 != 0:
        x = jnp.pad(x, ((0, 0), (0, 0), (0, 0), (0, 1)), mode="wrap")
    return x


def aps_upsample(x, polyphase_indices):
    """Polyphase zero-stuffing 2x upsample: phase p selects which (row, col)
    parity of the output receives x[b] (p: 0->(0,0), 1->(1,0), 2->(0,1), 3->(1,1)).

    # TODO(synk): per-batch data-dependent scatter is pure data movement left in
    # JAX; it has no clean static BlockSpec formulation.
    """
    B, C, N1, N2 = x.shape
    planes = [(polyphase_indices == p).astype(x.dtype)[:, None, None, None] * x
              for p in range(4)]
    row_even = jnp.stack([planes[0], planes[2]], axis=-1)   # (B,C,N1,N2,2)
    row_odd = jnp.stack([planes[1], planes[3]], axis=-1)
    rows = jnp.stack([row_even, row_odd], axis=-3)          # (B,C,N1,2,N2,2)
    return rows.reshape(B, C, 2 * N1, 2 * N2)


# ---------------------------------------------------------------------------
# KxK conv as im2col + the channel-mix Pallas GEMM (bias / BN / ReLU fused).
# ---------------------------------------------------------------------------
def conv2d_via_channel_mix(x, w, scale, shift, *, relu, pad, pad_mode="zeros"):
    # TODO(synk): im2col materializes kh*kw shifted input copies in HBM; a
    # dedicated halo-tiled conv kernel would avoid that traffic for large maps.
    B, C_in, H, W = x.shape
    C_out, _, kh, kw = w.shape
    if pad is not None:
        (pt, pb), (pleft, pright) = pad
        cfg = ((0, 0), (0, 0), (pt, pb), (pleft, pright))
        xp = jnp.pad(x, cfg, mode="wrap") if pad_mode == "circular" else jnp.pad(x, cfg)
    else:
        xp = x
    Hp, Wp = xp.shape[2], xp.shape[3]
    Ho, Wo = Hp - kh + 1, Wp - kw + 1
    cols = jnp.stack([xp[:, :, di:di + Ho, dj:dj + Wo]
                      for di in range(kh) for dj in range(kw)], axis=1)
    cols = cols.reshape(B, kh * kw * C_in, Ho * Wo)
    w2 = jnp.transpose(w, (0, 2, 3, 1)).reshape(C_out, kh * kw * C_in)
    y = channel_mix(cols, w2, scale, shift, relu=relu, out_dtype=x.dtype)
    return y.reshape(B, C_out, Ho, Wo)


# ---------------------------------------------------------------------------
# Full `Up` forward.
# ---------------------------------------------------------------------------
def up_forward(x1, x2, polyphase_indices, params, *, filter_size=3):
    # ---- self.up[0]: ApsUp ------------------------------------------------
    x = aps_pad(x1)
    x = aps_upsample(x, polyphase_indices)
    x = aps_blur(x, filter_size)
    # ---- self.up[1:3]: circular_pad((0,1,0,1)) + Conv(C -> C//2, k=2) ------
    c_half = params["up_w"].shape[0]
    x = conv2d_via_channel_mix(
        x, params["up_w"],
        scale=jnp.ones((c_half,), jnp.float32), shift=params["up_b"],
        relu=False, pad=((0, 1), (0, 1)), pad_mode="circular")
    # ---- skip concat (plain JAX data movement) ------------------------------
    x = jnp.concatenate([x2, x], axis=1)
    # ---- DoubleConv: (Conv k=3, pad=1 zeros -> BN -> ReLU) x 2 --------------
    for i in (1, 2):
        g, beta = params[f"bn{i}_gamma"], params[f"bn{i}_beta"]
        m, v = params[f"bn{i}_mean"], params[f"bn{i}_var"]
        s = g * lax.rsqrt(v + _BN_EPS)
        shift = (params[f"c{i}_b"] - m) * s + beta
        x = conv2d_via_channel_mix(x, params[f"c{i}_w"], scale=s, shift=shift,
                                   relu=True, pad=((1, 1), (1, 1)),
                                   pad_mode="zeros")
    return x


def init_up_params(key, in_channels, out_channels, dtype=jnp.float32):
    mid = out_channels
    ks = jax.random.split(key, 12)
    rnd = lambda k, shp, s=0.1: (s * jax.random.normal(k, shp, jnp.float32)).astype(dtype)
    return {
        "up_w": rnd(ks[0], (in_channels // 2, in_channels, 2, 2)),
        "up_b": 0.1 * jax.random.normal(ks[1], (in_channels // 2,), jnp.float32),
        "c1_w": rnd(ks[2], (mid, in_channels, 3, 3)),
        "c1_b": 0.1 * jax.random.normal(ks[3], (mid,), jnp.float32),
        "bn1_gamma": 1.0 + 0.1 * jax.random.normal(ks[4], (mid,), jnp.float32),
        "bn1_beta": 0.1 * jax.random.normal(ks[5], (mid,), jnp.float32),
        "bn1_mean": 0.1 * jax.random.normal(ks[6], (mid,), jnp.float32),
        "bn1_var": 1.0 + 0.1 * jnp.abs(jax.random.normal(ks[7], (mid,), jnp.float32)),
        "c2_w": rnd(ks[8], (out_channels, mid, 3, 3)),
        "c2_b": 0.1 * jax.random.normal(ks[9], (out_channels,), jnp.float32),
        "bn2_gamma": 1.0 + 0.1 * jax.random.normal(ks[10], (out_channels,), jnp.float32),
        "bn2_beta": 0.1 * jax.random.normal(ks[11], (out_channels,), jnp.float32),
        "bn2_mean": jnp.zeros((out_channels,), jnp.float32),
        "bn2_var": jnp.ones((out_channels,), jnp.float32),
    }


# ---------------------------------------------------------------------------
# Pure-JAX reference (lax.conv_general_dilated) for correctness checking.
# ---------------------------------------------------------------------------
def _conv2d_ref(x, w, b=None, *, pad=None, pad_mode="zeros", groups=1):
    if pad is not None:
        cfg = ((0, 0), (0, 0), pad[0], pad[1])
        x = jnp.pad(x, cfg, mode="wrap") if pad_mode == "circular" else jnp.pad(x, cfg)
    y = lax.conv_general_dilated(
        x, w, window_strides=(1, 1), padding="VALID",
        dimension_numbers=("NCHW", "OIHW", "NCHW"),
        feature_group_count=groups, precision=lax.Precision.HIGHEST)
    if b is not None:
        y = y + b[None, :, None, None]
    return y


def up_forward_reference(x1, x2, polyphase_indices, params, *, filter_size=3):
    x = aps_pad(x1)
    x = aps_upsample(x, polyphase_indices)
    if filter_size != 1:
        a = _BLUR_TAPS[filter_size]
        f2 = np.outer(a, a)
        f2 = f2 / f2.sum()
        C = x.shape[1]
        wd = jnp.asarray(np.tile(f2[None, None], (C, 1, 1, 1)), x.dtype)
        p0 = int((filter_size - 1) / 2)
        p1 = int(np.ceil((filter_size - 1) / 2.0))
        x = _conv2d_ref(x, wd, pad=((p0, p1), (p0, p1)), pad_mode="circular",
                        groups=C)
    x = _conv2d_ref(x, params["up_w"], params["up_b"],
                    pad=((0, 1), (0, 1)), pad_mode="circular")
    x = jnp.concatenate([x2, x], axis=1)
    for i in (1, 2):
        x = _conv2d_ref(x, params[f"c{i}_w"], params[f"c{i}_b"],
                        pad=((1, 1), (1, 1)), pad_mode="zeros")
        m, v = params[f"bn{i}_mean"], params[f"bn{i}_var"]
        g, beta = params[f"bn{i}_gamma"], params[f"bn{i}_beta"]
        x = ((x - m[None, :, None, None]) * lax.rsqrt(v + _BN_EPS)[None, :, None, None]
             * g[None, :, None, None] + beta[None, :, None, None])
        x = jnp.maximum(x, 0.0)
    return x


def _rel_err(y, y_ref):
    y = y.astype(jnp.float32)
    y_ref = y_ref.astype(jnp.float32)
    return float(jnp.linalg.norm(y - y_ref) / (jnp.linalg.norm(y_ref) + 1e-12))


if __name__ == "__main__":
    key = jax.random.PRNGKey(0)
    k_x1, k_x2, k_ph, k_par, k_gem = jax.random.split(key, 5)

    # Up(in_channels=8, out_channels=4) on 8x8 -> 16x16 feature maps.
    B, in_ch, out_ch, N = 2, 8, 4, 8
    x1 = jax.random.normal(k_x1, (B, in_ch, N, N), jnp.float32)
    x2 = jax.random.normal(k_x2, (B, in_ch // 2, 2 * N, 2 * N), jnp.float32)
    phase = jax.random.randint(k_ph, (B,), 0, 4)
    params = init_up_params(k_par, in_ch, out_ch)

    y = jax.block_until_ready(up_forward(x1, x2, phase, params))
    y_ref = up_forward_reference(x1, x2, phase, params)
    assert y.shape == (B, out_ch, 2 * N, 2 * N), y.shape
    # With f32 inputs + precision=HIGHEST the observed error is ~1e-6; the loose
    # bound only guards against a precision fallback on some toolchains.
    assert _rel_err(y, y_ref) < 1e-2, _rel_err(y, y_ref)

    # Extra coverage for the channel-mix GEMM: L-tiling with a partial tail
    # block and the fused scale/shift/ReLU epilogue.
    kg1, kg2, kg3 = jax.random.split(k_gem, 3)
    Bg, Ci, Co, L = 3, 128, 64, 1000
    xg = jax.random.normal(kg1, (Bg, Ci, L), jnp.float32)
    wg = 0.05 * jax.random.normal(kg2, (Co, Ci), jnp.float32)
    sg = 1.0 + 0.1 * jax.random.normal(kg3, (Co,), jnp.float32)
    bg = 0.1 * jnp.arange(Co, dtype=jnp.float32)
    yg = jax.block_until_ready(channel_mix(xg, wg, sg, bg, relu=True,
                                           tl_target=512))
    yg_ref = jnp.maximum(
        jnp.einsum("oc,bcl->bol", wg, xg, precision=lax.Precision.HIGHEST)
        * sg[None, :, None] + bg[None, :, None], 0.0)
    assert yg.shape == (Bg, Co, L)
    assert _rel_err(yg, yg_ref) < 1e-2, _rel_err(yg, yg_ref)

    print("KERNEL_OK")
</pallas_src>

<mosaic_0001>
module attributes {stable_mosaic.version = 11 : i64} {
  func.func @kernel(%arg0: i32, %arg1: memref<1x8x18x18xf32, #tpu.memory_space<vmem>>, %arg2: memref<1x8x16x16xf32, #tpu.memory_space<vmem>>) attributes {dimension_semantics = [#tpu.dimension_semantics<parallel>], iteration_bounds = array<i64: 2>, scalar_prefetch = 0 : i64, scratch_operands = 0 : i64, tpu.core_type = #tpu.core_type<tc>, window_params = [{transform_indices = @transform_0, window_bounds = array<i64: 1, 8, 18, 18>}, {transform_indices = @transform_1, window_bounds = array<i64: 1, 8, 16, 16>}]} {
    %c0 = arith.constant 0 : index
    %c0_0 = arith.constant 0 : index
    %c0_1 = arith.constant 0 : index
    %c0_2 = arith.constant 0 : index
    %0 = vector.load %arg1[%c0, %c0_0, %c0_1, %c0_2] : memref<1x8x18x18xf32, #tpu.memory_space<vmem>>, vector<1x8x18x18xf32>
    %1 = vector.shape_cast %0 : vector<1x8x18x18xf32> to vector<8x18x18xf32>
    %cst = arith.constant 0.000000e+00 : f32
    %2 = vector.broadcast %cst : f32 to vector<8x16x16xf32>
    %3 = vector.extract_strided_slice %1 {offsets = [0, 0, 0], sizes = [8, 16, 16], strides = [1, 1, 1]} : vector<8x18x18xf32> to vector<8x16x16xf32>
    %cst_3 = arith.constant 6.250000e-02 : f32
    %4 = vector.broadcast %cst_3 : f32 to vector<8x16x16xf32>
    %5 = arith.mulf %4, %3 : vector<8x16x16xf32>
    %6 = arith.addf %2, %5 : vector<8x16x16xf32>
    %7 = vector.extract_strided_slice %1 {offsets = [0, 0, 1], sizes = [8, 16, 16], strides = [1, 1, 1]} : vector<8x18x18xf32> to vector<8x16x16xf32>
    %cst_4 = arith.constant 1.250000e-01 : f32
    %8 = vector.broadcast %cst_4 : f32 to vector<8x16x16xf32>
    %9 = arith.mulf %8, %7 : vector<8x16x16xf32>
    %10 = arith.addf %6, %9 : vector<8x16x16xf32>
    %11 = vector.extract_strided_slice %1 {offsets = [0, 0, 2], sizes = [8, 16, 16], strides = [1, 1, 1]} : vector<8x18x18xf32> to vector<8x16x16xf32>
    %cst_5 = arith.constant 6.250000e-02 : f32
    %12 = vector.broadcast %cst_5 : f32 to vector<8x16x16xf32>
    %13 = arith.mulf %12, %11 : vector<8x16x16xf32>
    %14 = arith.addf %10, %13 : vector<8x16x16xf32>
    %15 = vector.extract_strided_slice %1 {offsets = [0, 1, 0], sizes = [8, 16, 16], strides = [1, 1, 1]} : vector<8x18x18xf32> to vector<8x16x16xf32>
    %cst_6 = arith.constant 1.250000e-01 : f32
    %16 = vector.broadcast %cst_6 : f32 to vector<8x16x16xf32>
    %17 = arith.mulf %16, %15 : vector<8x16x16xf32>
    %18 = arith.addf %14, %17 : vector<8x16x16xf32>
    %19 = vector.extract_strided_slice %1 {offsets = [0, 1, 1], sizes = [8, 16, 16], strides = [1, 1, 1]} : vector<8x18x18xf32> to vector<8x16x16xf32>
    %cst_7 = arith.constant 2.500000e-01 : f32
    %20 = vector.broadcast %cst_7 : f32 to vector<8x16x16xf32>
    %21 = arith.mulf %20, %19 : vector<8x16x16xf32>
    %22 = arith.addf %18, %21 : vector<8x16x16xf32>
    %23 = vector.extract_strided_slice %1 {offsets = [0, 1, 2], sizes = [8, 16, 16], strides = [1, 1, 1]} : vector<8x18x18xf32> to vector<8x16x16xf32>
    %cst_8 = arith.constant 1.250000e-01 : f32
    %24 = vector.broadcast %cst_8 : f32 to vector<8x16x16xf32>
    %25 = arith.mulf %24, %23 : vector<8x16x16xf32>
    %26 = arith.addf %22, %25 : vector<8x16x16xf32>
    %27 = vector.extract_strided_slice %1 {offsets = [0, 2, 0], sizes = [8, 16, 16], strides = [1, 1, 1]} : vector<8x18x18xf32> to vector<8x16x16xf32>
    %cst_9 = arith.constant 6.250000e-02 : f32
    %28 = vector.broadcast %cst_9 : f32 to vector<8x16x16xf32>
    %29 = arith.mulf %28, %27 : vector<8x16x16xf32>
    %30 = arith.addf %26, %29 : vector<8x16x16xf32>
    %31 = vector.extract_strided_slice %1 {offsets = [0, 2, 1], sizes = [8, 16, 16], strides = [1, 1, 1]} : vector<8x18x18xf32> to vector<8x16x16xf32>
    %cst_10 = arith.constant 1.250000e-01 : f32
    %32 = vector.broadcast %cst_10 : f32 to vector<8x16x16xf32>
    %33 = arith.mulf %32, %31 : vector<8x16x16xf32>
    %34 = arith.addf %30, %33 : vector<8x16x16xf32>
    %35 = vector.extract_strided_slice %1 {offsets = [0, 2, 2], sizes = [8, 16, 16], strides = [1, 1, 1]} : vector<8x18x18xf32> to vector<8x16x16xf32>
    %cst_11 = arith.constant 6.250000e-02 : f32
    %36 = vector.broadcast %cst_11 : f32 to vector<8x16x16xf32>
    %37 = arith.mulf %36, %35 : vector<8x16x16xf32>
    %38 = arith.addf %34, %37 : vector<8x16x16xf32>
    %c0_12 = arith.constant 0 : index
    %c0_13 = arith.constant 0 : index
    %c0_14 = arith.constant 0 : index
    %c0_15 = arith.constant 0 : index
    %39 = vector.load %arg2[%c0_12, %c0_13, %c0_14, %c0_15] : memref<1x8x16x16xf32, #tpu.memory_space<vmem>>, vector<1x8x16x16xf32>
    %40 = vector.shape_cast %39 : vector<1x8x16x16xf32> to vector<8x16x16xf32>
    %41 = vector.shape_cast %38 : vector<8x16x16xf32> to vector<1x8x16x16xf32>
    tpu.vector_store %arg2[%c0_12, %c0_13, %c0_14, %c0_15], %41 {strides = array<i32>} : memref<1x8x16x16xf32, #tpu.memory_space<vmem>>, vector<1x8x16x16xf32>,
    return
  }
  func.func @transform_0(%arg0: i32) -> (i32, i32, i32, i32) {
    %c0_i32 = arith.constant 0 : i32
    %c0_i32_0 = arith.constant 0 : i32
    %c0_i32_1 = arith.constant 0 : i32
    %c0_i32_2 = arith.constant 0 : i32
    return %arg0, %c0_i32, %c0_i32_0, %c0_i32_1 : i32, i32, i32, i32
  }
  func.func @transform_1(%arg0: i32) -> (i32, i32, i32, i32) {
    %c0_i32 = arith.constant 0 : i32
    %c0_i32_0 = arith.constant 0 : i32
    %c0_i32_1 = arith.constant 0 : i32
    %c0_i32_2 = arith.constant 0 : i32
    return %arg0, %c0_i32, %c0_i32_0, %c0_i32_1 : i32, i32, i32, i32
  }
}

</mosaic_0001>

<llo_original>
// kernel: tpu_custom_call.1
$region0: #{tpu_custom_call.1}
  #allocation0 [shape = 'u32[]', space=smem, size = 0x4, offset = 0x4, fixed_abs, tag = 'smem constant byte address 0x4 - core index']
  #allocation1 [shape = 'u32[144,128]{1,0:T(1,128)}', space=vmem, size = 0x12000, scoped, tag = 'internal scratch']
  %s0 = inlined_call_operand.vmem [shape: f32[2,8,18,18], index: 0, kind: input, shape index: {}]
  %s1 = inlined_call_operand.hbm [shape: f32[2,8,16,16], index: 1, kind: output, shape index: {}]
  %s2 = sld [smem:[#allocation0]]
  $region37: #{tpu_custom_call.1} parent=0
    _
  %s4 = ssub.s32 1, %s2
  %s5 = scalar_select 0, %s4, %s2
  $region1: #{tpu_custom_call.1} parent=0
    #allocation2 [shape = 'u8[131072]{0}', space=vmem, size = 0x20000, scoped, tag = 'output window, operand 0']
    #allocation3 [shape = 's32[2]{0}', space=sflag, size = 0x8, scoped, tag = 'scoped memory for tpu_custom_call.1']
    %6 = vsyncpa [#allocation3], 0
    %s7 = scalar_lea.sflag [#allocation3], 1
    %8 = vsyncpa %s7, 0
    loop: start=0, step=1, limit=4
    $region2: #{tpu_custom_call.1} parent=1 // loop_pre_header
      _
    $region3: #{tpu_custom_call.1} parent=1 // loop_header
      %s10 = sphi 0, %s14
      %p11 = scmp.ge.s32.totalorder %s10, 4
      %s20 = sphi 0, %s22
      %s23 = sphi 0, %s20
      %s24 = sphi 0, %s23
      %s40 = sphi 0, %s24
      %s46 = sphi 0, %s48
      %s49 = sphi 0, %s46
      %s50 = sphi 0, %s49
      %s66 = sphi 0, %s50
    $region4: #{tpu_custom_call.1} parent=1 // loop_header_branch
      %13 = sbr.rel (%p11) target = $region8
    $region5: #{tpu_custom_call.1} parent=1 // loop_body
      %s15 = ssub.s32 %s10, 1
      %s16 = ssub.s32 %s10, 2
      %s17 = sadd.s32 %s10, 1
      %s18 = ssub.s32 %s10, %s17
      %p19 = scmp.eq.s32.totalorder %s18, 0
      %s21 = sadd.s32 %s20, 1
      %s22 = scalar_select %p19, %s20, %s21
      %p25 = pneg %p19
      %p26 = scmp.eq.s32.totalorder %s10, 1
      %p27 = por %p25, %p26
      %p28 = scmp.ne.s32.totalorder %s20, %s23
      %p29 = scmp.eq.s32.totalorder %s10, 0
      %p30 = por %p28, %p29
      %p31 = scmp.ne.s32.totalorder %s20, %s23
      %p32 = scmp.eq.s32.totalorder %s15, 1
      %p33 = por %p31, %p32
      %p34 = scmp.ne.s32.totalorder %s23, %s24
      %p35 = scmp.eq.s32.totalorder %s15, 0
      %p36 = por %p34, %p35
      %p37 = scmp.ne.s32.totalorder %s23, %s24
      %p38 = scmp.eq.s32.totalorder %s16, 1
      %p39 = por %p37, %p38
      %p41 = scmp.ne.s32.totalorder %s24, %s40
      %p42 = scmp.eq.s32.totalorder %s16, 0
      %p43 = por %p41, %p42
      %s44 = ssub.s32 %s10, %s17
      %p45 = scmp.eq.s32.totalorder %s44, 0
      %s47 = sadd.s32 %s46, 1
      %s48 = scalar_select %p45, %s46, %s47
      %p51 = pneg %p45
      %p52 = scmp.eq.s32.totalorder %s10, 1
      %p53 = por %p51, %p52
      %p54 = scmp.ne.s32.totalorder %s46, %s49
      %p55 = scmp.eq.s32.totalorder %s10, 0
      %p56 = por %p54, %p55
      %p57 = scmp.ne.s32.totalorder %s46, %s49
      %p58 = scmp.eq.s32.totalorder %s15, 1
      %p59 = por %p57, %p58
      %p60 = scmp.ne.s32.totalorder %s49, %s50
      %p61 = scmp.eq.s32.totalorder %s15, 0
      %p62 = por %p60, %p61
      %p63 = scmp.ne.s32.totalorder %s49, %s50
      %p64 = scmp.eq.s32.totalorder %s16, 1
      %p65 = por %p63, %p64
      %p67 = scmp.ne.s32.totalorder %s50, %s66
      %p68 = scmp.eq.s32.totalorder %s16, 0
      %p69 = por %p67, %p68
      %p70 = scmp.le.s32.totalorder 1, %s10
      %p71 = scmp.lt.s32.totalorder %s10, 3
      %p72 = pnand %p70, %p71
      %p73 = pneg %p72
      // Predicated region
      $region9: #{tpu_custom_call.1} parent=5 // pred_check
        _
      $region10: #{tpu_custom_call.1} parent=5 // pred_check_branch
        %75 = sbr.rel (%p72) target = $region12
      $region11: #{tpu_custom_call.1} parent=5 // pred_region
        %s76 = ssub.s32 %s10, 1
      $region12: #{tpu_custom_call.1} parent=5 // pred_fallthru
        _
      %p77 = scmp.lt.s32.totalorder %s10, 2
      // Predicated region
      $region13: #{tpu_custom_call.1} parent=5 // pred_check
        %p78 = pneg %p77
      $region14: #{tpu_custom_call.1} parent=5 // pred_check_branch
        %80 = sbr.rel (%p78) target = $region16
      $region15: #{tpu_custom_call.1} parent=5 // pred_region
        // Predicated region
        $region17: #{tpu_custom_call.1} parent=15 // pred_check
          %p81 = pneg %p30
        $region18: #{tpu_custom_call.1} parent=15 // pred_check_branch
          %83 = sbr.rel (%p81) target = $region20
        $region19: #{tpu_custom_call.1} parent=15 // pred_region
          %p84 = scmp.lt.s32.totalorder %s10, 1
          %s85 = scalar_select %p84, %s10, 1
          %s86 = smul.addr %s85, 24
          %s87 = smul.addr %s86, 8
          %s88 = scalar_lea.vmem %s0, %s87
        $region20: #{tpu_custom_call.1} parent=15 // pred_fallthru
          _
      $region16: #{tpu_custom_call.1} parent=5 // pred_fallthru
        _
      %p89 = scmp.le.s32.totalorder 1, %s10
      %p90 = scmp.lt.s32.totalorder %s10, 3
      %p91 = pnand %p89, %p90
      %p92 = pneg %p91
      // Predicated region
      $region21: #{tpu_custom_call.1} parent=5 // pred_check
        _
      $region22: #{tpu_custom_call.1} parent=5 // pred_check_branch
        %94 = sbr.rel (%p91) target = $region24
      $region23: #{tpu_custom_call.1} parent=5 // pred_region
        %s95 = ssub.s32 %s10, 1
        %p96 = scmp.lt.s32.totalorder %s15, 1
        %s97 = scalar_select %p96, %s15, 1
        %s98 = smul.addr %s97, 24
        %s99 = smul.addr %s98, 8
        %s100 = scalar_lea.vmem %s0, %s99
        %p101 = pneg %p36
        %p102 = pneg %p33
        %p103 = pneg %p62
        %p104 = pneg %p59
        %s105 = sand.u32 %s49, 1
        %s106 = scalar_lea.sflag [#allocation3], %s105
        %s107 = sand.u32 %s49, 1
        %s108 = smul.addr %s107, 128
        %s109 = scalar_lea.vmem [#allocation2], %s108
        %p110 = scmp.lt.s32.totalorder %s15, 1
        %s111 = scalar_select %p110, %s15, 1
        %s112 = smul.addr %s111, 24
        %s113 = smul.addr %s112, 8
        %s114 = scalar_lea.vmem %s0, %s113
        %v115 = vld [vmem:[%s114] sm:$0xff]
        %v116 = vld [vmem:[%s114 + $0x8] sm:$0xff]
        %v117 = vld [vmem:[%s114 + $0x10] sm:$0x3]
        %v118 = vld [vmem:[%s114 + $0x18] sm:$0xff]
        %v119 = vld [vmem:[%s114 + $0x20] sm:$0xff]
        %v120 = vld [vmem:[%s114 + $0x28] sm:$0x3]
        %v121 = vld [vmem:[%s114 + $0x30] sm:$0xff]
        %v122 = vld [vmem:[%s114 + $0x38] sm:$0xff]
        %v123 = vld [vmem:[%s114 + $0x40] sm:$0x3]
        %v124 = vld [vmem:[%s114 + $0x48] sm:$0xff]
        %v125 = vld [vmem:[%s114 + $0x50] sm:$0xff]
        %v126 = vld [vmem:[%s114 + $0x58] sm:$0x3]
        %v127 = vld [vmem:[%s114 + $0x60] sm:$0xff]
        %v128 = vld [vmem:[%s114 + $0x68] sm:$0xff]
        %v129 = vld [vmem:[%s114 + $0x70] sm:$0x3]
        %v130 = vld [vmem:[%s114 + $0x78] sm:$0xff]
        %v131 = vld [vmem:[%s114 + $0x80] sm:$0xff]
        %v132 = vld [vmem:[%s114 + $0x88] sm:$0x3]
        %v133 = vld [vmem:[%s114 + $0x90] sm:$0xff]
        %v134 = vld [vmem:[%s114 + $0x98] sm:$0xff]
        %v135 = vld [vmem:[%s114 + $0xa0] sm:$0x3]
        %v136 = vld [vmem:[%s114 + $0xa8] sm:$0xff]
        %v137 = vld [vmem:[%s114 + $0xb0] sm:$0xff]
        %v138 = vld [vmem:[%s114 + $0xb8] sm:$0x3]
        %v139 = vmul.f32 %v115, 0.0625
        %v140 = vmul.f32 %v116, 0.0625
        %v141 = vmul.f32 %v118, 0.0625
        %v142 = vmul.f32 %v119, 0.0625
        %v143 = vmul.f32 %v121, 0.0625
        %v144 = vmul.f32 %v122, 0.0625
        %v145 = vmul.f32 %v124, 0.0625
        %v146 = vmul.f32 %v125, 0.0625
        %v147 = vmul.f32 %v127, 0.0625
        %v148 = vmul.f32 %v128, 0.0625
        %v149 = vmul.f32 %v130, 0.0625
        %v150 = vmul.f32 %v131, 0.0625
        %v151 = vmul.f32 %v133, 0.0625
        %v152 = vmul.f32 %v134, 0.0625
        %v153 = vmul.f32 %v136, 0.0625
        %v154 = vmul.f32 %v137, 0.0625
        %v155 = vadd.f32 %v139, 0.0
        %v156 = vadd.f32 %v140, 0.0
        %v157 = vadd.f32 %v141, 0.0
        %v158 = vadd.f32 %v142, 0.0
        %v159 = vadd.f32 %v143, 0.0
        %v160 = vadd.f32 %v144, 0.0
        %v161 = vadd.f32 %v145, 0.0
        %v162 = vadd.f32 %v146, 0.0
        %v163 = vadd.f32 %v147, 0.0
        %v164 = vadd.f32 %v148, 0.0
        %v165 = vadd.f32 %v149, 0.0
        %v166 = vadd.f32 %v150, 0.0
        %v167 = vadd.f32 %v151, 0.0
        %v168 = vadd.f32 %v152, 0.0
        %v169 = vadd.f32 %v153, 0.0
        %v170 = vadd.f32 %v154, 0.0
        %v171 = vmul.f32 %v115, 0.125
        %v172 = vmul.f32 %v116, 0.125
        %v173 = vmul.f32 %v118, 0.125
        %v174 = vmul.f32 %v119, 0.125
        %v175 = vmul.f32 %v121, 0.125
        %v176 = vmul.f32 %v122, 0.125
        %v177 = vmul.f32 %v124, 0.125
        %v178 = vmul.f32 %v125, 0.125
        %v179 = vmul.f32 %v127, 0.125
        %v180 = vmul.f32 %v128, 0.125
        %v181 = vmul.f32 %v130, 0.125
        %v182 = vmul.f32 %v131, 0.125
        %v183 = vmul.f32 %v133, 0.125
        %v184 = vmul.f32 %v134, 0.125
        %v185 = vmul.f32 %v136, 0.125
        %v186 = vmul.f32 %v137, 0.125
        %203 = vrot.lane.b32.xlu0 %v171, 127
        %v204 = vpop.permute.xlu0 %203
        %205 = vrot.lane.b32.xlu0 %v172, 127
        %v206 = vpop.permute.xlu0 %205
        %207 = vrot.lane.b32.xlu0 %v173, 127
        %v208 = vpop.permute.xlu0 %207
        %209 = vrot.lane.b32.xlu0 %v174, 127
        %v210 = vpop.permute.xlu0 %209
        %211 = vrot.lane.b32.xlu0 %v175, 127
        %v212 = vpop.permute.xlu0 %211
        %213 = vrot.lane.b32.xlu0 %v176, 127
        %v214 = vpop.permute.xlu0 %213
        %215 = vrot.lane.b32.xlu0 %v177, 127
        %v216 = vpop.permute.xlu0 %215
        %217 = vrot.lane.b32.xlu0 %v178, 127
        %v218 = vpop.permute.xlu0 %217
        %219 = vrot.lane.b32.xlu0 %v179, 127
        %v220 = vpop.permute.xlu0 %219
        %221 = vrot.lane.b32.xlu0 %v180, 127
        %v222 = vpop.permute.xlu0 %221
        %223 = vrot.lane.b32.xlu0 %v181, 127
        %v224 = vpop.permute.xlu0 %223
        %225 = vrot.lane.b32.xlu0 %v182, 127
        %v226 = vpop.permute.xlu0 %225
        %227 = vrot.lane.b32.xlu0 %v183, 127
        %v228 = vpop.permute.xlu0 %227
        %229 = vrot.lane.b32.xlu0 %v184, 127
        %v230 = vpop.permute.xlu0 %229
        %231 = vrot.lane.b32.xlu0 %v185, 127
        %v232 = vpop.permute.xlu0 %231
        %233 = vrot.lane.b32.xlu0 %v186, 127
        %v234 = vpop.permute.xlu0 %233
        %v251 = vadd.f32 %v155, %v204
        %v252 = vadd.f32 %v156, %v206
        %v253 = vadd.f32 %v157, %v208
        %v254 = vadd.f32 %v158, %v210
        %v255 = vadd.f32 %v159, %v212
        %v256 = vadd.f32 %v160, %v214
        %v257 = vadd.f32 %v161, %v216
        %v258 = vadd.f32 %v162, %v218
        %v259 = vadd.f32 %v163, %v220
        %v260 = vadd.f32 %v164, %v222
        %v261 = vadd.f32 %v165, %v224
        %v262 = vadd.f32 %v166, %v226
        %v263 = vadd.f32 %v167, %v228
        %v264 = vadd.f32 %v168, %v230
        %v265 = vadd.f32 %v169, %v232
        %v266 = vadd.f32 %v170, %v234
        %283 = vrot.lane.b32.xlu0 %v139, 126
        %v284 = vpop.permute.xlu0 %283
        %285 = vrot.lane.b32.xlu0 %v140, 126
        %v286 = vpop.permute.xlu0 %285
        %287 = vrot.lane.b32.xlu0 %v141, 126
        %v288 = vpop.permute.xlu0 %287
        %289 = vrot.lane.b32.xlu0 %v142, 126
        %v290 = vpop.permute.xlu0 %289
        %291 = vrot.lane.b32.xlu0 %v143, 126
        %v292 = vpop.permute.xlu0 %291
        %293 = vrot.lane.b32.xlu0 %v144, 126
        %v294 = vpop.permute.xlu0 %293
        %295 = vrot.lane.b32.xlu0 %v145, 126
        %v296 = vpop.permute.xlu0 %295
        %297 = vrot.lane.b32.xlu0 %v146, 126
        %v298 = vpop.permute.xlu0 %297
        %299 = vrot.lane.b32.xlu0 %v147, 126
        %v300 = vpop.permute.xlu0 %299
        %301 = vrot.lane.b32.xlu0 %v148, 126
        %v302 = vpop.permute.xlu0 %301
        %303 = vrot.lane.b32.xlu0 %v149, 126
        %v304 = vpop.permute.xlu0 %303
        %305 = vrot.lane.b32.xlu0 %v150, 126
        %v306 = vpop.permute.xlu0 %305
        %307 = vrot.lane.b32.xlu0 %v151, 126
        %v308 = vpop.permute.xlu0 %307
        %309 = vrot.lane.b32.xlu0 %v152, 126
        %v310 = vpop.permute.xlu0 %309
        %311 = vrot.lane.b32.xlu0 %v153, 126
        %v312 = vpop.permute.xlu0 %311
        %313 = vrot.lane.b32.xlu0 %v154, 126
        %v314 = vpop.permute.xlu0 %313
        %v331 = vadd.f32 %v251, %v284
        %v332 = vadd.f32 %v252, %v286
        %v333 = vadd.f32 %v253, %v288
        %v334 = vadd.f32 %v254, %v290
        %v335 = vadd.f32 %v255, %v292
        %v336 = vadd.f32 %v256, %v294
        %v337 = vadd.f32 %v257, %v296
        %v338 = vadd.f32 %v258, %v298
        %v339 = vadd.f32 %v259, %v300
        %v340 = vadd.f32 %v260, %v302
        %v341 = vadd.f32 %v261, %v304
        %v342 = vadd.f32 %v262, %v306
        %v343 = vadd.f32 %v263, %v308
        %v344 = vadd.f32 %v264, %v310
        %v345 = vadd.f32 %v265, %v312
        %v346 = vadd.f32 %v266, %v314
        %v347 = vmul.f32 %v117, 0.125
        %v348 = vmul.f32 %v120, 0.125
        %v349 = vmul.f32 %v123, 0.125
        %v350 = vmul.f32 %v126, 0.125
        %v351 = vmul.f32 %v129, 0.125
        %v352 = vmul.f32 %v132, 0.125
        %v353 = vmul.f32 %v135, 0.125
        %v354 = vmul.f32 %v138, 0.125
        %vm363 = vcmask 1046528
        %v364 = vrot.slane %v171, 1
        %v365 = vrot.slane %v172, 1
        %v366 = vsel %vm363, %v364, %v365
        %v367 = vrot.slane %v347, 1
        %v368 = vsel %vm363, %v365, %v367
        %v369 = vrot.slane %v173, 1
        %v370 = vrot.slane %v174, 1
        %v371 = vsel %vm363, %v369, %v370
        %v372 = vrot.slane %v348, 1
        %v373 = vsel %vm363, %v370, %v372
        %v374 = vrot.slane %v175, 1
        %v375 = vrot.slane %v176, 1
        %v376 = vsel %vm363, %v374, %v375
        %v377 = vrot.slane %v349, 1
        %v378 = vsel %vm363, %v375, %v377
        %v379 = vrot.slane %v177, 1
        %v380 = vrot.slane %v178, 1
        %v381 = vsel %vm363, %v379, %v380
        %v382 = vrot.slane %v350, 1
        %v383 = vsel %vm363, %v380, %v382
        %v384 = vrot.slane %v179, 1
        %v385 = vrot.slane %v180, 1
        %v386 = vsel %vm363, %v384, %v385
        %v387 = vrot.slane %v351, 1
        %v388 = vsel %vm363, %v385, %v387
        %v389 = vrot.slane %v181, 1
        %v390 = vrot.slane %v182, 1
        %v391 = vsel %vm363, %v389, %v390
        %v392 = vrot.slane %v352, 1
        %v393 = vsel %vm363, %v390, %v392
        %v394 = vrot.slane %v183, 1
        %v395 = vrot.slane %v184, 1
        %v396 = vsel %vm363, %v394, %v395
        %v397 = vrot.slane %v353, 1
        %v398 = vsel %vm363, %v395, %v397
        %v399 = vrot.slane %v185, 1
        %v400 = vrot.slane %v186, 1
        %v401 = vsel %vm363, %v399, %v400
        %v402 = vrot.slane %v354, 1
        %v403 = vsel %vm363, %v400, %v402
        %v420 = vadd.f32 %v331, %v366
        %v421 = vadd.f32 %v332, %v368
        %v422 = vadd.f32 %v333, %v371
        %v423 = vadd.f32 %v334, %v373
        %v424 = vadd.f32 %v335, %v376
        %v425 = vadd.f32 %v336, %v378
        %v426 = vadd.f32 %v337, %v381
        %v427 = vadd.f32 %v338, %v383
        %v428 = vadd.f32 %v339, %v386
        %v429 = vadd.f32 %v340, %v388
        %v430 = vadd.f32 %v341, %v391
        %v431 = vadd.f32 %v342, %v393
        %v432 = vadd.f32 %v343, %v396
        %v433 = vadd.f32 %v344, %v398
        %v434 = vadd.f32 %v345, %v401
        %v435 = vadd.f32 %v346, %v403
        %v436 = vmul.f32 %v115, 0.25
        %v437 = vmul.f32 %v116, 0.25
        %v438 = vmul.f32 %v117, 0.25
        %v439 = vmul.f32 %v118, 0.25
        %v440 = vmul.f32 %v119, 0.25
        %v441 = vmul.f32 %v120, 0.25
        %v442 = vmul.f32 %v121, 0.25
        %v443 = vmul.f32 %v122, 0.25
        %v444 = vmul.f32 %v123, 0.25
        %v445 = vmul.f32 %v124, 0.25
        %v446 = vmul.f32 %v125, 0.25
        %v447 = vmul.f32 %v126, 0.25
        %v448 = vmul.f32 %v127, 0.25
        %v449 = vmul.f32 %v128, 0.25
        %v450 = vmul.f32 %v129, 0.25
        %v451 = vmul.f32 %v130, 0.25
        %v452 = vmul.f32 %v131, 0.25
        %v453 = vmul.f32 %v132, 0.25
        %v454 = vmul.f32 %v133, 0.25
        %v455 = vmul.f32 %v134, 0.25
        %v456 = vmul.f32 %v135, 0.25
        %v457 = vmul.f32 %v136, 0.25
        %v458 = vmul.f32 %v137, 0.25
        %v459 = vmul.f32 %v138, 0.25
        %v484 = vrot.slane %v436, 1
        %v485 = vrot.slane %v437, 1
        %v486 = vsel %vm363, %v484, %v485
        %v487 = vrot.slane %v438, 1
        %v488 = vsel %vm363, %v485, %v487
        %v489 = vrot.slane %v439, 1
        %v490 = vrot.slane %v440, 1
        %v491 = vsel %vm363, %v489, %v490
        %v492 = vrot.slane %v441, 1
        %v493 = vsel %vm363, %v490, %v492
        %v494 = vrot.slane %v442, 1
        %v495 = vrot.slane %v443, 1
        %v496 = vsel %vm363, %v494, %v495
        %v497 = vrot.slane %v444, 1
        %v498 = vsel %vm363, %v495, %v497
        %v499 = vrot.slane %v445, 1
        %v500 = vrot.slane %v446, 1
        %v501 = vsel %vm363, %v499, %v500
        %v502 = vrot.slane %v447, 1
        %v503 = vsel %vm363, %v500, %v502
        %v504 = vrot.slane %v448, 1
        %v505 = vrot.slane %v449, 1
        %v506 = vsel %vm363, %v504, %v505
        %v507 = vrot.slane %v450, 1
        %v508 = vsel %vm363, %v505, %v507
        %v509 = vrot.slane %v451, 1
        %v510 = vrot.slane %v452, 1
        %v511 = vsel %vm363, %v509, %v510
        %v512 = vrot.slane %v453, 1
        %v513 = vsel %vm363, %v510, %v512
        %v514 = vrot.slane %v454, 1
        %v515 = vrot.slane %v455, 1
        %v516 = vsel %vm363, %v514, %v515
        %v517 = vrot.slane %v456, 1
        %v518 = vsel %vm363, %v515, %v517
        %v519 = vrot.slane %v457, 1
        %v520 = vrot.slane %v458, 1
        %v521 = vsel %vm363, %v519, %v520
        %v522 = vrot.slane %v459, 1
        %v523 = vsel %vm363, %v520, %v522
        %524 = vrot.lane.b32.xlu0 %v486, 127
        %v525 = vpop.permute.xlu0 %524
        %526 = vrot.lane.b32.xlu0 %v488, 127
        %v527 = vpop.permute.xlu0 %526
        %528 = vrot.lane.b32.xlu0 %v491, 127
        %v529 = vpop.permute.xlu0 %528
        %530 = vrot.lane.b32.xlu0 %v493, 127
        %v531 = vpop.permute.xlu0 %530
        %532 = vrot.lane.b32.xlu0 %v496, 127
        %v533 = vpop.permute.xlu0 %532
        %534 = vrot.lane.b32.xlu0 %v498, 127
        %v535 = vpop.permute.xlu0 %534
        %536 = vrot.lane.b32.xlu0 %v501, 127
        %v537 = vpop.permute.xlu0 %536
        %538 = vrot.lane.b32.xlu0 %v503, 127
        %v539 = vpop.permute.xlu0 %538
        %540 = vrot.lane.b32.xlu0 %v506, 127
        %v541 = vpop.permute.xlu0 %540
        %542 = vrot.lane.b32.xlu0 %v508, 127
        %v543 = vpop.permute.xlu0 %542
        %544 = vrot.lane.b32.xlu0 %v511, 127
        %v545 = vpop.permute.xlu0 %544
        %546 = vrot.lane.b32.xlu0 %v513, 127
        %v547 = vpop.permute.xlu0 %546
        %548 = vrot.lane.b32.xlu0 %v516, 127
        %v549 = vpop.permute.xlu0 %548
        %550 = vrot.lane.b32.xlu0 %v518, 127
        %v551 = vpop.permute.xlu0 %550
        %552 = vrot.lane.b32.xlu0 %v521, 127
        %v553 = vpop.permute.xlu0 %552
        %554 = vrot.lane.b32.xlu0 %v523, 127
        %v555 = vpop.permute.xlu0 %554
        %v572 = vadd.f32 %v420, %v525
        %v573 = vadd.f32 %v421, %v527
        %v574 = vadd.f32 %v422, %v529
        %v575 = vadd.f32 %v423, %v531
        %v576 = vadd.f32 %v424, %v533
        %v577 = vadd.f32 %v425, %v535
        %v578 = vadd.f32 %v426, %v537
        %v579 = vadd.f32 %v427, %v539
        %v580 = vadd.f32 %v428, %v541
        %v581 = vadd.f32 %v429, %v543
        %v582 = vadd.f32 %v430, %v545
        %v583 = vadd.f32 %v431, %v547
        %v584 = vadd.f32 %v432, %v549
        %v585 = vadd.f32 %v433, %v551
        %v586 = vadd.f32 %v434, %v553
        %v587 = vadd.f32 %v435, %v555
        %588 = vrot.lane.b32.xlu0 %v366, 126
        %v589 = vpop.permute.xlu0 %588
        %590 = vrot.lane.b32.xlu0 %v368, 126
        %v591 = vpop.permute.xlu0 %590
        %592 = vrot.lane.b32.xlu0 %v371, 126
        %v593 = vpop.permute.xlu0 %592
        %594 = vrot.lane.b32.xlu0 %v373, 126
        %v595 = vpop.permute.xlu0 %594
        %596 = vrot.lane.b32.xlu0 %v376, 126
        %v597 = vpop.permute.xlu0 %596
        %598 = vrot.lane.b32.xlu0 %v378, 126
        %v599 = vpop.permute.xlu0 %598
        %600 = vrot.lane.b32.xlu0 %v381, 126
        %v601 = vpop.permute.xlu0 %600
        %602 = vrot.lane.b32.xlu0 %v383, 126
        %v603 = vpop.permute.xlu0 %602
        %604 = vrot.lane.b32.xlu0 %v386, 126
        %v605 = vpop.permute.xlu0 %604
        %606 = vrot.lane.b32.xlu0 %v388, 126
        %v607 = vpop.permute.xlu0 %606
        %608 = vrot.lane.b32.xlu0 %v391, 126
        %v609 = vpop.permute.xlu0 %608
        %610 = vrot.lane.b32.xlu0 %v393, 126
        %v611 = vpop.permute.xlu0 %610
        %612 = vrot.lane.b32.xlu0 %v396, 126
        %v613 = vpop.permute.xlu0 %612
        %614 = vrot.lane.b32.xlu0 %v398, 126
        %v615 = vpop.permute.xlu0 %614
        %616 = vrot.lane.b32.xlu0 %v401, 126
        %v617 = vpop.permute.xlu0 %616
        %618 = vrot.lane.b32.xlu0 %v403, 126
        %v619 = vpop.permute.xlu0 %618
        %v636 = vadd.f32 %v572, %v589
        %v637 = vadd.f32 %v573, %v591
        %v638 = vadd.f32 %v574, %v593
        %v639 = vadd.f32 %v575, %v595
        %v640 = vadd.f32 %v576, %v597
        %v641 = vadd.f32 %v577, %v599
        %v642 = vadd.f32 %v578, %v601
        %v643 = vadd.f32 %v579, %v603
        %v644 = vadd.f32 %v580, %v605
        %v645 = vadd.f32 %v581, %v607
        %v646 = vadd.f32 %v582, %v609
        %v647 = vadd.f32 %v583, %v611
        %v648 = vadd.f32 %v584, %v613
        %v649 = vadd.f32 %v585, %v615
        %v650 = vadd.f32 %v586, %v617
        %v651 = vadd.f32 %v587, %v619
        %v652 = vmul.f32 %v117, 0.0625
        %v653 = vmul.f32 %v120, 0.0625
        %v654 = vmul.f32 %v123, 0.0625
        %v655 = vmul.f32 %v126, 0.0625
        %v656 = vmul.f32 %v129, 0.0625
        %v657 = vmul.f32 %v132, 0.0625
        %v658 = vmul.f32 %v135, 0.0625
        %v659 = vmul.f32 %v138, 0.0625
        %vm668 = vcmask 1045504
        %v669 = vrot.slane %v139, 2
        %v670 = vrot.slane %v140, 2
        %v671 = vsel %vm668, %v669, %v670
        %v672 = vrot.slane %v652, 2
        %v673 = vsel %vm668, %v670, %v672
        %v674 = vrot.slane %v141, 2
        %v675 = vrot.slane %v142, 2
        %v676 = vsel %vm668, %v674, %v675
        %v677 = vrot.slane %v653, 2
        %v678 = vsel %vm668, %v675, %v677
        %v679 = vrot.slane %v143, 2
        %v680 = vrot.slane %v144, 2
        %v681 = vsel %vm668, %v679, %v680
        %v682 = vrot.slane %v654, 2
        %v683 = vsel %vm668, %v680, %v682
        %v684 = vrot.slane %v145, 2
        %v685 = vrot.slane %v146, 2
        %v686 = vsel %vm668, %v684, %v685
        %v687 = vrot.slane %v655, 2
        %v688 = vsel %vm668, %v685, %v687
        %v689 = vrot.slane %v147, 2
        %v690 = vrot.slane %v148, 2
        %v691 = vsel %vm668, %v689, %v690
        %v692 = vrot.slane %v656, 2
        %v693 = vsel %vm668, %v690, %v692
        %v694 = vrot.slane %v149, 2
        %v695 = vrot.slane %v150, 2
        %v696 = vsel %vm668, %v694, %v695
        %v697 = vrot.slane %v657, 2
        %v698 = vsel %vm668, %v695, %v697
        %v699 = vrot.slane %v151, 2
        %v700 = vrot.slane %v152, 2
        %v701 = vsel %vm668, %v699, %v700
        %v702 = vrot.slane %v658, 2
        %v703 = vsel %vm668, %v700, %v702
        %v704 = vrot.slane %v153, 2
        %v705 = vrot.slane %v154, 2
        %v706 = vsel %vm668, %v704, %v705
        %v707 = vrot.slane %v659, 2
        %v708 = vsel %vm668, %v705, %v707
        %v725 = vadd.f32 %v636, %v671
        %v726 = vadd.f32 %v637, %v673
        %v727 = vadd.f32 %v638, %v676
        %v728 = vadd.f32 %v639, %v678
        %v729 = vadd.f32 %v640, %v681
        %v730 = vadd.f32 %v641, %v683
        %v731 = vadd.f32 %v642, %v686
        %v732 = vadd.f32 %v643, %v688
        %v733 = vadd.f32 %v644, %v691
        %v734 = vadd.f32 %v645, %v693
        %v735 = vadd.f32 %v646, %v696
        %v736 = vadd.f32 %v647, %v698
        %v737 = vadd.f32 %v648, %v701
        %v738 = vadd.f32 %v649, %v703
        %v739 = vadd.f32 %v650, %v706
        %v740 = vadd.f32 %v651, %v708
        %v741 = vrot.slane %v171, 2
        %v742 = vrot.slane %v172, 2
        %v743 = vsel %vm668, %v741, %v742
        %v744 = vrot.slane %v347, 2
        %v745 = vsel %vm668, %v742, %v744
        %v746 = vrot.slane %v173, 2
        %v747 = vrot.slane %v174, 2
        %v748 = vsel %vm668, %v746, %v747
        %v749 = vrot.slane %v348, 2
        %v750 = vsel %vm668, %v747, %v749
        %v751 = vrot.slane %v175, 2
        %v752 = vrot.slane %v176, 2
        %v753 = vsel %vm668, %v751, %v752
        %v754 = vrot.slane %v349, 2
        %v755 = vsel %vm668, %v752, %v754
        %v756 = vrot.slane %v177, 2
        %v757 = vrot.slane %v178, 2
        %v758 = vsel %vm668, %v756, %v757
        %v759 = vrot.slane %v350, 2
        %v760 = vsel %vm668, %v757, %v759
        %v761 = vrot.slane %v179, 2
        %v762 = vrot.slane %v180, 2
        %v763 = vsel %vm668, %v761, %v762
        %v764 = vrot.slane %v351, 2
        %v765 = vsel %vm668, %v762, %v764
        %v766 = vrot.slane %v181, 2
        %v767 = vrot.slane %v182, 2
        %v768 = vsel %vm668, %v766, %v767
        %v769 = vrot.slane %v352, 2
        %v770 = vsel %vm668, %v767, %v769
        %v771 = vrot.slane %v183, 2
        %v772 = vrot.slane %v184, 2
        %v773 = vsel %vm668, %v771, %v772
        %v774 = vrot.slane %v353, 2
        %v775 = vsel %vm668, %v772, %v774
        %v776 = vrot.slane %v185, 2
        %v777 = vrot.slane %v186, 2
        %v778 = vsel %vm668, %v776, %v777
        %v779 = vrot.slane %v354, 2
        %v780 = vsel %vm668, %v777, %v779
        %781 = vrot.lane.b32.xlu0 %v743, 127
        %v782 = vpop.permute.xlu0 %781
        %783 = vrot.lane.b32.xlu0 %v745, 127
        %v784 = vpop.permute.xlu0 %783
        %785 = vrot.lane.b32.xlu0 %v748, 127
        %v786 = vpop.permute.xlu0 %785
        %787 = vrot.lane.b32.xlu0 %v750, 127
        %v788 = vpop.permute.xlu0 %787
        %789 = vrot.lane.b32.xlu0 %v753, 127
        %v790 = vpop.permute.xlu0 %789
        %791 = vrot.lane.b32.xlu0 %v755, 127
        %v792 = vpop.permute.xlu0 %791
        %793 = vrot.lane.b32.xlu0 %v758, 127
        %v794 = vpop.permute.xlu0 %793
        %795 = vrot.lane.b32.xlu0 %v760, 127
        %v796 = vpop.permute.xlu0 %795
        %797 = vrot.lane.b32.xlu0 %v763, 127
        %v798 = vpop.permute.xlu0 %797
        %799 = vrot.lane.b32.xlu0 %v765, 127
        %v800 = vpop.permute.xlu0 %799
        %801 = vrot.lane.b32.xlu0 %v768, 127
        %v802 = vpop.permute.xlu0 %801
        %803 = vrot.lane.b32.xlu0 %v770, 127
        %v804 = vpop.permute.xlu0 %803
        %805 = vrot.lane.b32.xlu0 %v773, 127
        %v806 = vpop.permute.xlu0 %805
        %807 = vrot.lane.b32.xlu0 %v775, 127
        %v808 = vpop.permute.xlu0 %807
        %809 = vrot.lane.b32.xlu0 %v778, 127
        %v810 = vpop.permute.xlu0 %809
        %811 = vrot.lane.b32.xlu0 %v780, 127
        %v812 = vpop.permute.xlu0 %811
        %v829 = vadd.f32 %v725, %v782
        %v830 = vadd.f32 %v726, %v784
        %v831 = vadd.f32 %v727, %v786
        %v832 = vadd.f32 %v728, %v788
        %v833 = vadd.f32 %v729, %v790
        %v834 = vadd.f32 %v730, %v792
        %v835 = vadd.f32 %v731, %v794
        %v836 = vadd.f32 %v732, %v796
        %v837 = vadd.f32 %v733, %v798
        %v838 = vadd.f32 %v734, %v800
        %v839 = vadd.f32 %v735, %v802
        %v840 = vadd.f32 %v736, %v804
        %v841 = vadd.f32 %v737, %v806
        %v842 = vadd.f32 %v738, %v808
        %v843 = vadd.f32 %v739, %v810
        %v844 = vadd.f32 %v740, %v812
        %845 = vrot.lane.b32.xlu0 %v671, 126
        %v846 = vpop.permute.xlu0 %845
        %847 = vrot.lane.b32.xlu0 %v673, 126
        %v848 = vpop.permute.xlu0 %847
        %849 = vrot.lane.b32.xlu0 %v676, 126
        %v850 = vpop.permute.xlu0 %849
        %851 = vrot.lane.b32.xlu0 %v678, 126
        %v852 = vpop.permute.xlu0 %851
        %853 = vrot.lane.b32.xlu0 %v681, 126
        %v854 = vpop.permute.xlu0 %853
        %855 = vrot.lane.b32.xlu0 %v683, 126
        %v856 = vpop.permute.xlu0 %855
        %857 = vrot.lane.b32.xlu0 %v686, 126
        %v858 = vpop.permute.xlu0 %857
        %859 = vrot.lane.b32.xlu0 %v688, 126
        %v860 = vpop.permute.xlu0 %859
        %861 = vrot.lane.b32.xlu0 %v691, 126
        %v862 = vpop.permute.xlu0 %861
        %863 = vrot.lane.b32.xlu0 %v693, 126
        %v864 = vpop.permute.xlu0 %863
        %865 = vrot.lane.b32.xlu0 %v696, 126
        %v866 = vpop.permute.xlu0 %865
        %867 = vrot.lane.b32.xlu0 %v698, 126
        %v868 = vpop.permute.xlu0 %867
        %869 = vrot.lane.b32.xlu0 %v701, 126
        %v870 = vpop.permute.xlu0 %869
        %871 = vrot.lane.b32.xlu0 %v703, 126
        %v872 = vpop.permute.xlu0 %871
        %873 = vrot.lane.b32.xlu0 %v706, 126
        %v874 = vpop.permute.xlu0 %873
        %875 = vrot.lane.b32.xlu0 %v708, 126
        %v876 = vpop.permute.xlu0 %875
        %v893 = vadd.f32 %v829, %v846
        %v894 = vadd.f32 %v830, %v848
        %v895 = vadd.f32 %v831, %v850
        %v896 = vadd.f32 %v832, %v852
        %v897 = vadd.f32 %v833, %v854
        %v898 = vadd.f32 %v834, %v856
        %v899 = vadd.f32 %v835, %v858
        %v900 = vadd.f32 %v836, %v860
        %v901 = vadd.f32 %v837, %v862
        %v902 = vadd.f32 %v838, %v864
        %v903 = vadd.f32 %v839, %v866
        %v904 = vadd.f32 %v840, %v868
        %v905 = vadd.f32 %v841, %v870
        %v906 = vadd.f32 %v842, %v872
        %v907 = vadd.f32 %v843, %v874
        %v908 = vadd.f32 %v844, %v876
        %vm909 = vcmask 130048
        %910 = vst.msk [vmem:[%s109] sm:$0xff] %vm909, %v893
        %911 = vst.msk [vmem:[%s109 + $0x8] sm:$0xff] %vm909, %v894
        %912 = vst.msk [vmem:[%s109 + $0x10] sm:$0xff] %vm909, %v895
        %913 = vst.msk [vmem:[%s109 + $0x18] sm:$0xff] %vm909, %v896
        %914 = vst.msk [vmem:[%s109 + $0x20] sm:$0xff] %vm909, %v897
        %915 = vst.msk [vmem:[%s109 + $0x28] sm:$0xff] %vm909, %v898
        %916 = vst.msk [vmem:[%s109 + $0x30] sm:$0xff] %vm909, %v899
        %917 = vst.msk [vmem:[%s109 + $0x38] sm:$0xff] %vm909, %v900
        %918 = vst.msk [vmem:[%s109 + $0x40] sm:$0xff] %vm909, %v901
        %919 = vst.msk [vmem:[%s109 + $0x48] sm:$0xff] %vm909, %v902
        %920 = vst.msk [vmem:[%s109 + $0x50] sm:$0xff] %vm909, %v903
        %921 = vst.msk [vmem:[%s109 + $0x58] sm:$0xff] %vm909, %v904
        %922 = vst.msk [vmem:[%s109 + $0x60] sm:$0xff] %vm909, %v905
        %923 = vst.msk [vmem:[%s109 + $0x68] sm:$0xff] %vm909, %v906
        %924 = vst.msk [vmem:[%s109 + $0x70] sm:$0xff] %vm909, %v907
        %925 = vst.msk [vmem:[%s109 + $0x78] sm:$0xff] %vm909, %v908
        %s926 = sand.u32 %s49, 1
        %s927 = scalar_lea.sflag [#allocation3], %s926
        %s928 = sand.u32 %s49, 1
        %s929 = smul.addr %s928, 128
        %s930 = scalar_lea.vmem [#allocation2], %s929
        // Predicated region
        $region25: #{tpu_custom_call.1} parent=23 // pred_check
          %p931 = pneg %p59
        $region26: #{tpu_custom_call.1} parent=23 // pred_check_branch
          %933 = sbr.rel (%p931) target = $region28
        $region27: #{tpu_custom_call.1} parent=23 // pred_region
          %s935 = ssub.s32 2048, 2048
          %936 = vsyncadd %s927, %s935
          %s937 = smul.addr %s15, 16
          %s938 = smul.addr %s937, 128
          %s939 = scalar_lea.hbm %s1, %s938
          %s940 = sshll.u32 %s930, 4
          %s941 = int_to_ptr.vmem [resolvable:$true] %s940
          %946 = dma.vmem_to_hbm [thread:$0]  %s941, 2048, %s939, %s927, 128, 128, 8
        $region28: #{tpu_custom_call.1} parent=23 // pred_fallthru
          _
      $region24: #{tpu_custom_call.1} parent=5 // pred_fallthru
        _
      %p947 = scmp.le.s32.totalorder 2, %s10
      // Predicated region
      $region29: #{tpu_custom_call.1} parent=5 // pred_check
        %p948 = pneg %p947
      $region30: #{tpu_custom_call.1} parent=5 // pred_check_branch
        %950 = sbr.rel (%p948) target = $region32
      $region31: #{tpu_custom_call.1} parent=5 // pred_region
        %s951 = ssub.s32 %s10, 2
        // Predicated region
        $region33: #{tpu_custom_call.1} parent=31 // pred_check
          %p952 = pneg %p65
        $region34: #{tpu_custom_call.1} parent=31 // pred_check_branch
          %954 = sbr.rel (%p952) target = $region36
        $region35: #{tpu_custom_call.1} parent=31 // pred_region
          %s955 = sand.u32 %s50, 1
          %s956 = scalar_lea.sflag [#allocation3], %s955
          %s957 = sand.u32 %s50, 1
          %s958 = smul.addr %s957, 128
          %s959 = scalar_lea.vmem [#allocation2], %s958
          %960 = dma.done %s956, 2048
        $region36: #{tpu_custom_call.1} parent=31 // pred_fallthru
          _
      $region32: #{tpu_custom_call.1} parent=5 // pred_fallthru
        _
    $region6: #{tpu_custom_call.1} parent=1 // loop_footer
      %s14 = sadd.s32 1, %s10
    $region7: #{tpu_custom_call.1} parent=1 // loop_footer_branch
      %9 = sbr.rel target = $region3
    $region8: #{tpu_custom_call.1} parent=1 // loop_exit
      _
    %961 = vsyncpa [#allocation3], 1
    %s962 = scalar_lea.sflag [#allocation3], 1
    %963 = vsyncpa %s962, 1

</llo_original>
